<compile_context>
chip_gen: v6e
topology: v6e:2x2x1
jax: 0.10.0
libtpu: 0.0.40
codegen_flags: <defaults>
</compile_context>

<pallas_src>
import functools

import jax
import jax.numpy as jnp
from jax.experimental import pallas as pl
from jax.experimental.pallas import tpu as pltpu

BN_EPS = 1e-5
_LANE = 128
_TN_MAX = 2048                         # max batch rows per grid step (tiled path)
_FAST_VMEM_BUDGET = 12 * 1024 * 1024   # conservative vs v5e's 16 MiB scoped default
_TILED_VMEM_BUDGET = 12 * 1024 * 1024


def _round_up(v, m):
    return (v + m - 1) // m * m


# ---------------------------------------------------------------------------
# Fast path: single fused kernel (whole batch resident in VMEM, no grid).
# ---------------------------------------------------------------------------
def _fused_kernel(x_ref, w1_ref, g_ref, be_ref, w2_ref, b2_ref, o_ref, *, n_rows):
    # In-kernel f32 -> bf16 cast (no wrapper cast pass); b1 omitted (cancels under
    # train-mode BN mean subtraction).
    xb = x_ref[...].astype(jnp.bfloat16)
    h = jnp.dot(xb, w1_ref[...], preferred_element_type=jnp.float32)     # (N, H) f32

    inv_n = 1.0 / n_rows
    mean = jnp.sum(h, axis=0, keepdims=True) * inv_n
    # Single-pass biased variance, clamped at 0 to guard f32 cancellation.
    var = jnp.maximum(jnp.sum(h * h, axis=0, keepdims=True) * inv_n - mean * mean, 0.0)
    scale = g_ref[...] * jax.lax.rsqrt(var + BN_EPS)
    shift = be_ref[...] - mean * scale

    h = jnp.maximum(h * scale + shift, 0.0)                               # BN + ReLU
    out = jnp.dot(h.astype(jnp.bfloat16), w2_ref[...],
                  preferred_element_type=jnp.float32)
    o_ref[...] = (out + b2_ref[...]).astype(o_ref.dtype)


def _fast_path_bytes(n, d, hdim, o_pad):
    """Rough VMEM footprint of the fused kernel (double-buffered I/O + intermediates)."""
    io = 2 * n * d * 4 + 2 * n * o_pad * 4                # x / out tiles
    interm = n * hdim * (2 * 4 + 2)                       # h f32 copies + bf16 copy
    weights = 2 * (d * hdim * 2 + hdim * o_pad * 2) + 8 * (hdim + o_pad) * 4
    return io + interm + weights


# ---------------------------------------------------------------------------
# Tiled path, phase 1: accumulate BN statistics of h = x @ W1 over the batch;
# fold the BN affine into a single (1, H) scale / shift at the last grid step.
# ---------------------------------------------------------------------------
def _stats_kernel(x_ref, w1_ref, g_ref, be_ref, scale_ref, shift_ref,
                  sum_sc, sq_sc, *, n_rows, tn):
    i = pl.program_id(0)

    @pl.when(i == 0)
    def _():
        sum_sc[...] = jnp.zeros_like(sum_sc)
        sq_sc[...] = jnp.zeros_like(sq_sc)

    xb = x_ref[...].astype(jnp.bfloat16)
    h = jnp.dot(xb, w1_ref[...], preferred_element_type=jnp.float32)

    # Ragged last tile: grid is cdiv(n, tn); rows past the real batch hold
    # unspecified data, so zero their contribution with an iota row mask.
    row = i * tn + jax.lax.broadcasted_iota(jnp.int32, (tn, 1), 0)
    h = jnp.where(row < n_rows, h, 0.0)

    sum_sc[...] += jnp.sum(h, axis=0, keepdims=True)
    sq_sc[...] += jnp.sum(h * h, axis=0, keepdims=True)

    @pl.when(i == pl.num_programs(0) - 1)
    def _():
        inv_n = 1.0 / n_rows
        mean = sum_sc[...] * inv_n
        var = jnp.maximum(sq_sc[...] * inv_n - mean * mean, 0.0)   # clamp: no NaN
        scale = g_ref[...] * jax.lax.rsqrt(var + BN_EPS)
        scale_ref[...] = scale
        shift_ref[...] = be_ref[...] - mean * scale


# ---------------------------------------------------------------------------
# Tiled path, phase 2: recompute h per tile, apply folded BN + ReLU, second matmul.
# Out-of-bounds rows of the ragged last tile are dropped by the masked writeback.
# ---------------------------------------------------------------------------
def _apply_kernel(x_ref, w1_ref, scale_ref, shift_ref, w2_ref, b2_ref, o_ref):
    xb = x_ref[...].astype(jnp.bfloat16)
    h = jnp.dot(xb, w1_ref[...], preferred_element_type=jnp.float32)
    h = jnp.maximum(h * scale_ref[...] + shift_ref[...], 0.0)     # folded BN + ReLU
    out = jnp.dot(h.astype(jnp.bfloat16), w2_ref[...],
                  preferred_element_type=jnp.float32)
    o_ref[...] = (out + b2_ref[...]).astype(o_ref.dtype)


def _pick_tn(n, d, hdim, o_pad):
    """Batch tile for the tiled path: as large as VMEM allows (<= _TN_MAX), balanced
    across the grid, and keeping >= 2 grid steps so v7x megacore can shard phase 2."""
    per_row = 2 * d * 4 + 2 * o_pad * 4 + hdim * 6        # dbl-buffered x/out + h copies
    weights = 2 * (d * hdim * 2 + hdim * o_pad * 2) + 8 * (hdim + o_pad) * 4
    avail = max(_TILED_VMEM_BUDGET - weights, 512 * 1024)
    tn_cap = max(8, min(_TN_MAX, (avail // per_row) // 8 * 8))
    nt = max(2, pl.cdiv(n, tn_cap))
    return max(8, min(tn_cap, _round_up(pl.cdiv(n, nt), 8)))


# ---------------------------------------------------------------------------
# Wrapper
# ---------------------------------------------------------------------------
def prepare_params(params):
    """One-time conversion of PyTorch-layout params to kernel layout.

    - transpose Linear weights to (in, out), cast matmul weights to bf16
    - zero-pad the output feature dim to a multiple of 128 (lane-dense stores)
    - drop b1 (cancelled exactly by train-mode BatchNorm's mean subtraction)
    """
    w1 = params["w1"].T.astype(jnp.bfloat16)                     # (D, H)
    gamma = params["gamma"].reshape(1, -1).astype(jnp.float32)   # (1, H)
    beta = params["beta"].reshape(1, -1).astype(jnp.float32)     # (1, H)
    w2 = params["w2"].T.astype(jnp.float32)                      # (H, O)
    b2 = params["b2"].reshape(1, -1).astype(jnp.float32)         # (1, O)
    o = w2.shape[1]
    o_pad = _round_up(o, _LANE)
    if o_pad != o:
        w2 = jnp.pad(w2, ((0, 0), (0, o_pad - o)))
        b2 = jnp.pad(b2, ((0, 0), (0, o_pad - o)))
    return {
        "w1": w1,
        "gamma": gamma,
        "beta": beta,
        "w2": w2.astype(jnp.bfloat16),
        "b2": b2,
        "out_dim": o,
    }


def net_encoder_forward(x, prep, *, force_tiled=False, tn_override=None):
    """x: (N, input_dim) float32.  prep: output of prepare_params."""
    n, d = x.shape
    hdim = prep["w1"].shape[1]
    o_pad = prep["w2"].shape[1]
    o = prep["out_dim"]

    x = x.astype(jnp.float32)   # stays f32 in HBM; cast to bf16 inside the kernels

    # -------- fused single-call fast path (whole batch resident in VMEM) --------
    if not force_tiled and _fast_path_bytes(n, d, hdim, o_pad) <= _FAST_VMEM_BUDGET:
        out = pl.pallas_call(
            functools.partial(_fused_kernel, n_rows=n),
            out_shape=jax.ShapeDtypeStruct((n, o_pad), jnp.float32),
        )(x, prep["w1"], prep["gamma"], prep["beta"], prep["w2"], prep["b2"])
        return out[:, :o]

    # -------- two-phase tiled path (large batches) --------
    tn = tn_override if tn_override is not None else _pick_tn(n, d, hdim, o_pad)
    nt = pl.cdiv(n, tn)

    x_spec = pl.BlockSpec((tn, d), lambda i: (i, 0))
    res = lambda shape: pl.BlockSpec(shape, lambda i: (0, 0))   # grid-resident operand

    # phase 1: BN statistics folded into scale / shift
    scale, shift = pl.pallas_call(
        functools.partial(_stats_kernel, n_rows=n, tn=tn),
        out_shape=(jax.ShapeDtypeStruct((1, hdim), jnp.float32),
                   jax.ShapeDtypeStruct((1, hdim), jnp.float32)),
        grid=(nt,),
        in_specs=[x_spec, res((d, hdim)), res((1, hdim)), res((1, hdim))],
        out_specs=(res((1, hdim)), res((1, hdim))),
        scratch_shapes=[pltpu.VMEM((1, hdim), jnp.float32),
                        pltpu.VMEM((1, hdim), jnp.float32)],
        compiler_params=pltpu.CompilerParams(dimension_semantics=("arbitrary",)),
    )(x, prep["w1"], prep["gamma"], prep["beta"])

    # phase 2: normalize + ReLU + second matmul (parallel over batch tiles)
    out = pl.pallas_call(
        _apply_kernel,
        out_shape=jax.ShapeDtypeStruct((n, o_pad), jnp.float32),
        grid=(nt,),
        in_specs=[x_spec, res((d, hdim)), res((1, hdim)), res((1, hdim)),
                  res((hdim, o_pad)), res((1, o_pad))],
        out_specs=pl.BlockSpec((tn, o_pad), lambda i: (i, 0)),
        compiler_params=pltpu.CompilerParams(dimension_semantics=("parallel",)),
    )(x, prep["w1"], scale, shift, prep["w2"], prep["b2"])

    return out[:, :o]


# ---------------------------------------------------------------------------
# Params / reference
# ---------------------------------------------------------------------------
def init_params(key, input_dim, hidden_dim=128, output_dim=32):
    """Deterministic init mirroring PyTorch defaults (kaiming-uniform style bounds)."""
    k1, k2, k3, k4 = jax.random.split(key, 4)
    bound1 = 1.0 / jnp.sqrt(input_dim)
    bound2 = 1.0 / jnp.sqrt(hidden_dim)
    return {
        "w1": jax.random.uniform(k1, (hidden_dim, input_dim), jnp.float32, -bound1, bound1),
        "b1": jax.random.uniform(k2, (hidden_dim,), jnp.float32, -bound1, bound1),
        "gamma": jnp.ones((hidden_dim,), jnp.float32),
        "beta": jnp.zeros((hidden_dim,), jnp.float32),
        "w2": jax.random.uniform(k3, (output_dim, hidden_dim), jnp.float32, -bound2, bound2),
        "b2": jax.random.uniform(k4, (output_dim,), jnp.float32, -bound2, bound2),
    }


def _reference(x, params):
    """Pure-JAX f32 reference of the PyTorch forward (training-mode BatchNorm1d)."""
    h = x @ params["w1"].T + params["b1"]
    mean = jnp.mean(h, axis=0, keepdims=True)
    var = jnp.mean((h - mean) ** 2, axis=0, keepdims=True)
    h = (h - mean) / jnp.sqrt(var + BN_EPS)
    h = h * params["gamma"] + params["beta"]
    h = jnp.maximum(h, 0.0)
    return h @ params["w2"].T + params["b2"]


if __name__ == "__main__":
    key = jax.random.PRNGKey(0)
    k_x, k_p, k_x2 = jax.random.split(key, 3)

    input_dim, hidden_dim, output_dim = 64, 128, 32
    params = init_params(k_p, input_dim, hidden_dim, output_dim)
    prep = prepare_params(params)   # one-time layout prep (not in the per-call path)

    # Small batch -> fused single-call fast path.
    x_small = jax.random.normal(k_x, (8, input_dim), jnp.float32)
    out_small = jax.block_until_ready(net_encoder_forward(x_small, prep))
    ref_small = _reference(x_small, params)
    assert out_small.shape == (8, output_dim)
    # bf16 matmul inputs -> slightly looser tolerance vs the f32 reference.
    assert jnp.allclose(out_small, ref_small, atol=5e-2, rtol=5e-2), "fast path mismatch"

    # Ragged batch forced through the two-phase tiled path (exercises the cdiv grid,
    # in-kernel row masking, and the resident accumulator/fold).
    x_big = jax.random.normal(k_x2, (203, input_dim), jnp.float32)
    out_big = jax.block_until_ready(
        net_encoder_forward(x_big, prep, force_tiled=True, tn_override=64))
    ref_big = _reference(x_big, params)
    assert out_big.shape == (203, output_dim)
    assert jnp.allclose(out_big, ref_big, atol=5e-2, rtol=5e-2), "tiled path mismatch"

    print("KERNEL_OK")
</pallas_src>

<mosaic_0001>
module attributes {stable_mosaic.version = 11 : i64} {
  func.func @_fused_kernel(%arg0: memref<8x64xf32, #tpu.memory_space<vmem>>, %arg1: memref<64x128xbf16, #tpu.memory_space<vmem>>, %arg2: memref<1x128xf32, #tpu.memory_space<vmem>>, %arg3: memref<1x128xf32, #tpu.memory_space<vmem>>, %arg4: memref<128x128xbf16, #tpu.memory_space<vmem>>, %arg5: memref<1x128xf32, #tpu.memory_space<vmem>>, %arg6: memref<8x128xf32, #tpu.memory_space<vmem>>) attributes {dimension_semantics = [], scalar_prefetch = 0 : i64, scratch_operands = 0 : i64, tpu.core_type = #tpu.core_type<tc>} {
    %c0 = arith.constant 0 : index
    %c0_0 = arith.constant 0 : index
    %0 = vector.load %arg0[%c0, %c0_0] : memref<8x64xf32, #tpu.memory_space<vmem>>, vector<8x64xf32>
    %1 = arith.truncf %0 : vector<8x64xf32> to vector<8x64xbf16>
    %c0_1 = arith.constant 0 : index
    %c0_2 = arith.constant 0 : index
    %2 = vector.load %arg1[%c0_1, %c0_2] : memref<64x128xbf16, #tpu.memory_space<vmem>>, vector<64x128xbf16>
    %cst = arith.constant dense<0.000000e+00> : vector<8x128xf32>
    %3 = tpu.matmul %1, %2, %cst {dimension_numbers = #tpu.dot_dimension_numbers<[1], [0], [0], [1], [0, 0, 1, 1], [], []>} : vector<8x64xbf16>, vector<64x128xbf16>, vector<8x128xf32> -> vector<8x128xf32>
    %cst_3 = arith.constant dense<0.000000e+00> : vector<128xf32>
    %4 = vector.multi_reduction <add>, %3, %cst_3 [0] : vector<8x128xf32> to vector<128xf32>
    %5 = vector.shape_cast %4 : vector<128xf32> to vector<1x128xf32>
    %cst_4 = arith.constant 1.250000e-01 : f32
    %6 = vector.broadcast %cst_4 : f32 to vector<1x128xf32>
    %7 = arith.mulf %5, %6 : vector<1x128xf32>
    %8 = arith.mulf %3, %3 : vector<8x128xf32>
    %cst_5 = arith.constant dense<0.000000e+00> : vector<128xf32>
    %9 = vector.multi_reduction <add>, %8, %cst_5 [0] : vector<8x128xf32> to vector<128xf32>
    %10 = vector.shape_cast %9 : vector<128xf32> to vector<1x128xf32>
    %cst_6 = arith.constant 1.250000e-01 : f32
    %11 = vector.broadcast %cst_6 : f32 to vector<1x128xf32>
    %12 = arith.mulf %10, %11 : vector<1x128xf32>
    %13 = arith.mulf %7, %7 : vector<1x128xf32>
    %14 = arith.subf %12, %13 : vector<1x128xf32>
    %cst_7 = arith.constant 0.000000e+00 : f32
    %15 = vector.broadcast %cst_7 : f32 to vector<1x128xf32>
    %16 = arith.maximumf %14, %15 : vector<1x128xf32>
    %c0_8 = arith.constant 0 : index
    %c0_9 = arith.constant 0 : index
    %17 = vector.load %arg2[%c0_8, %c0_9] : memref<1x128xf32, #tpu.memory_space<vmem>>, vector<1x128xf32>
    %cst_10 = arith.constant 9.99999974E-6 : f32
    %18 = vector.broadcast %cst_10 : f32 to vector<1x128xf32>
    %19 = arith.addf %16, %18 : vector<1x128xf32>
    %20 = math.rsqrt %19 : vector<1x128xf32>
    %21 = arith.mulf %17, %20 : vector<1x128xf32>
    %c0_11 = arith.constant 0 : index
    %c0_12 = arith.constant 0 : index
    %22 = vector.load %arg3[%c0_11, %c0_12] : memref<1x128xf32, #tpu.memory_space<vmem>>, vector<1x128xf32>
    %23 = arith.mulf %7, %21 : vector<1x128xf32>
    %24 = arith.subf %22, %23 : vector<1x128xf32>
    %25 = vector.broadcast %21 : vector<1x128xf32> to vector<8x128xf32>
    %26 = arith.mulf %3, %25 : vector<8x128xf32>
    %27 = vector.broadcast %24 : vector<1x128xf32> to vector<8x128xf32>
    %28 = arith.addf %26, %27 : vector<8x128xf32>
    %cst_13 = arith.constant 0.000000e+00 : f32
    %29 = vector.broadcast %cst_13 : f32 to vector<8x128xf32>
    %30 = arith.maximumf %28, %29 : vector<8x128xf32>
    %31 = arith.truncf %30 : vector<8x128xf32> to vector<8x128xbf16>
    %c0_14 = arith.constant 0 : index
    %c0_15 = arith.constant 0 : index
    %32 = vector.load %arg4[%c0_14, %c0_15] : memref<128x128xbf16, #tpu.memory_space<vmem>>, vector<128x128xbf16>
    %cst_16 = arith.constant dense<0.000000e+00> : vector<8x128xf32>
    %33 = tpu.matmul %31, %32, %cst_16 {dimension_numbers = #tpu.dot_dimension_numbers<[1], [0], [0], [1], [0, 0, 1, 1], [], []>} : vector<8x128xbf16>, vector<128x128xbf16>, vector<8x128xf32> -> vector<8x128xf32>
    %c0_17 = arith.constant 0 : index
    %c0_18 = arith.constant 0 : index
    %34 = vector.load %arg5[%c0_17, %c0_18] : memref<1x128xf32, #tpu.memory_space<vmem>>, vector<1x128xf32>
    %35 = vector.broadcast %34 : vector<1x128xf32> to vector<8x128xf32>
    %36 = arith.addf %33, %35 : vector<8x128xf32>
    %c0_19 = arith.constant 0 : index
    %c0_20 = arith.constant 0 : index
    %37 = vector.load %arg6[%c0_19, %c0_20] : memref<8x128xf32, #tpu.memory_space<vmem>>, vector<8x128xf32>
    tpu.vector_store %arg6[%c0_19, %c0_20], %36 {strides = array<i32>} : memref<8x128xf32, #tpu.memory_space<vmem>>, vector<8x128xf32>,
    return
  }
}

</mosaic_0001>

<llo_original>
// kernel: tpu_custom_call.1
$region0: #{tpu_custom_call.1}
  #allocation0 [shape = 'u32[]', space=smem, size = 0x4, offset = 0x4, fixed_abs, tag = 'smem constant byte address 0x4 - core index']
  #allocation1 [shape = 'u32[144,128]{1,0:T(1,128)}', space=vmem, size = 0x12000, scoped, tag = 'internal scratch']
  %s0 = inlined_call_operand.hbm [shape: f32[8,64], index: 0, kind: input, shape index: {}]
  %s1 = inlined_call_operand.hbm [shape: bf16[64,128], index: 1, kind: input, shape index: {}]
  %s2 = inlined_call_operand.vmem [shape: f32[1,128], index: 2, kind: input, shape index: {}]
  %s3 = inlined_call_operand.vmem [shape: f32[1,128], index: 3, kind: input, shape index: {}]
  %s4 = inlined_call_operand.hbm [shape: bf16[128,128], index: 4, kind: input, shape index: {}]
  %s5 = inlined_call_operand.vmem [shape: f32[1,128], index: 5, kind: input, shape index: {}]
  %s6 = inlined_call_operand.hbm [shape: f32[8,128], index: 6, kind: output, shape index: {}]
  %s7 = sld [smem:[#allocation0]]
  $region46: #{tpu_custom_call.1} parent=0
    _
  %s9 = ssub.s32 1, %s7
  %s10 = scalar_select 0, %s9, %s7
  $region1: #{tpu_custom_call.1} parent=0
    #allocation2 [shape = 'u8[4096]{0}', space=vmem, size = 0x1000, scoped, tag = 'input window, operand 0, single buffered']
    #allocation3 [shape = 's32[1]{0}', space=sflag, size = 0x4, scoped, tag = 'scoped memory for tpu_custom_call.1']
    #allocation4 [shape = 's32[1]{0}', space=sflag, size = 0x4, scoped, tag = 'scoped memory for tpu_custom_call.1']
    #allocation5 [shape = 'u8[16384]{0}', space=vmem, size = 0x4000, scoped, tag = 'input window, operand 1, single buffered']
    #allocation6 [shape = 's32[1]{0}', space=sflag, size = 0x4, scoped, tag = 'scoped memory for tpu_custom_call.1']
    #allocation7 [shape = 'u8[32768]{0}', space=vmem, size = 0x8000, scoped, tag = 'input window, operand 4, single buffered']
    #allocation8 [shape = 'u8[4096]{0}', space=vmem, size = 0x1000, scoped, tag = 'output window, operand 0, single buffered']
    %11 = vsyncpa [#allocation3], 0
    %12 = vsyncpa [#allocation6], 0
    %13 = vsyncpa [#allocation4], 0
    // Predicated region
    $region2: #{tpu_custom_call.1} parent=1 // pred_check
      _
    $region3: #{tpu_custom_call.1} parent=1 // pred_check_branch
      %15 = sbr.rel (0) target = $region5
    $region4: #{tpu_custom_call.1} parent=1 // pred_region
      %s17 = ssub.s32 128, 128
      %18 = vsyncadd [#allocation3], %s17
      %s20 = sshll.u32 [#allocation2], 4
      %s21 = int_to_ptr.vmem [resolvable:$true] %s20
      %23 = dma.hbm_to_vmem [thread:$0]  %s0, 128, %s21, [#allocation3]
    $region5: #{tpu_custom_call.1} parent=1 // pred_fallthru
      _
    // Predicated region
    $region6: #{tpu_custom_call.1} parent=1 // pred_check
      _
    $region7: #{tpu_custom_call.1} parent=1 // pred_check_branch
      %25 = sbr.rel (0) target = $region9
    $region8: #{tpu_custom_call.1} parent=1 // pred_region
      %s27 = ssub.s32 512, 512
      %28 = vsyncadd [#allocation6], %s27
      %s29 = sshll.u32 [#allocation5], 4
      %s30 = int_to_ptr.vmem [resolvable:$true] %s29
      %35 = dma.hbm_to_vmem [thread:$0]  %s1, 512, %s30, [#allocation6], 64, 64, 4
    $region9: #{tpu_custom_call.1} parent=1 // pred_fallthru
      _
    // Predicated region
    $region10: #{tpu_custom_call.1} parent=1 // pred_check
      _
    $region11: #{tpu_custom_call.1} parent=1 // pred_check_branch
      %37 = sbr.rel (0) target = $region13
    $region12: #{tpu_custom_call.1} parent=1 // pred_region
      _
    $region13: #{tpu_custom_call.1} parent=1 // pred_fallthru
      _
    // Predicated region
    $region14: #{tpu_custom_call.1} parent=1 // pred_check
      _
    $region15: #{tpu_custom_call.1} parent=1 // pred_check_branch
      %39 = sbr.rel (0) target = $region17
    $region16: #{tpu_custom_call.1} parent=1 // pred_region
      _
    $region17: #{tpu_custom_call.1} parent=1 // pred_fallthru
      _
    // Predicated region
    $region18: #{tpu_custom_call.1} parent=1 // pred_check
      _
    $region19: #{tpu_custom_call.1} parent=1 // pred_check_branch
      %41 = sbr.rel (0) target = $region21
    $region20: #{tpu_custom_call.1} parent=1 // pred_region
      %s43 = ssub.s32 1024, 1024
      %44 = vsyncadd [#allocation6], %s43
      %s45 = sshll.u32 [#allocation7], 4
      %s46 = int_to_ptr.vmem [resolvable:$true] %s45
      %51 = dma.hbm_to_vmem [thread:$0]  %s4, 1024, %s46, [#allocation6], 64, 64, 4
    $region21: #{tpu_custom_call.1} parent=1 // pred_fallthru
      _
    // Predicated region
    $region22: #{tpu_custom_call.1} parent=1 // pred_check
      _
    $region23: #{tpu_custom_call.1} parent=1 // pred_check_branch
      %53 = sbr.rel (0) target = $region25
    $region24: #{tpu_custom_call.1} parent=1 // pred_region
      _
    $region25: #{tpu_custom_call.1} parent=1 // pred_fallthru
      _
    // Predicated region
    $region26: #{tpu_custom_call.1} parent=1 // pred_check
      _
    $region27: #{tpu_custom_call.1} parent=1 // pred_check_branch
      %55 = sbr.rel (0) target = $region29
    $region28: #{tpu_custom_call.1} parent=1 // pred_region
      %56 = dma.done [#allocation3], 128
    $region29: #{tpu_custom_call.1} parent=1 // pred_fallthru
      _
    // Predicated region
    $region30: #{tpu_custom_call.1} parent=1 // pred_check
      _
    $region31: #{tpu_custom_call.1} parent=1 // pred_check_branch
      %58 = sbr.rel (0) target = $region33
    $region32: #{tpu_custom_call.1} parent=1 // pred_region
      %59 = dma.done [#allocation6], 512
    $region33: #{tpu_custom_call.1} parent=1 // pred_fallthru
      _
    // Predicated region
    $region34: #{tpu_custom_call.1} parent=1 // pred_check
      _
    $region35: #{tpu_custom_call.1} parent=1 // pred_check_branch
      %61 = sbr.rel (0) target = $region37
    $region36: #{tpu_custom_call.1} parent=1 // pred_region
      %62 = dma.done [#allocation6], 1024
    $region37: #{tpu_custom_call.1} parent=1 // pred_fallthru
      _
    %v64 = vld [vmem:[#allocation2] sm:$0xff]
    %v65 = vpack.c.bf16 %v64, %v64
    %v66 = vld [vmem:[#allocation5] sm:$0xf]
    %v67 = vld [vmem:[#allocation5 + $0x4] sm:$0xf]
    %v68 = vld [vmem:[#allocation5 + $0x8] sm:$0xf]
    %v69 = vld [vmem:[#allocation5 + $0xc] sm:$0xf]
    %v70 = vld [vmem:[#allocation5 + $0x10] sm:$0xf]
    %v71 = vld [vmem:[#allocation5 + $0x14] sm:$0xf]
    %v72 = vld [vmem:[#allocation5 + $0x18] sm:$0xf]
    %v73 = vld [vmem:[#allocation5 + $0x1c] sm:$0xf]
    %v82 = vunpack.c.l.b16 %v66
    %v83 = vunpack.c.l.b16 %v67
    %v84 = vunpack.c.l.b16 %v68
    %v85 = vunpack.c.l.b16 %v69
    %v86 = vunpack.c.l.b16 %v70
    %v87 = vunpack.c.l.b16 %v71
    %v88 = vunpack.c.l.b16 %v72
    %v89 = vunpack.c.l.b16 %v73
    %v90 = vpack.c.b16 %v83, %v82
    %v91 = vpack.c.b16 %v85, %v84
    %v92 = vpack.c.b16 %v87, %v86
    %v93 = vpack.c.b16 %v89, %v88
    %vm98 = vcmask 523264
    %v100 = vsel %vm98, %v65, 0
    %102 = vmatprep.subr.bf16.mxu0 0
    %103 = vmatpush1.bf16.msra.mxu0 0
    %104 = vmatprep.subr.bf16.mxu0 0
    %105 = vmatpush1.bf16.msra.mxu0 0
    %106 = vmatprep.subr.bf16.mxu0 0
    %107 = vmatpush1.bf16.msra.mxu0 0
    %108 = vmatprep.subr.bf16.mxu0 0
    %109 = vmatpush1.bf16.msra.mxu0 0
    %110 = vmatprep.subr.bf16.mxu0 0
    %111 = vmatpush1.bf16.msra.mxu0 %v93
    %112 = vmatprep.subr.bf16.mxu0 0
    %113 = vmatpush1.bf16.msra.mxu0 %v92
    %114 = vmatprep.subr.bf16.mxu0 0
    %115 = vmatpush1.bf16.msra.mxu0 %v91
    %116 = vmatprep.subr.bf16.mxu0 0
    %117 = vmatpush1.bf16.msra.mxu0 %v90
    %118 = vmatprep.subr.bf16.mxu0 0
    %119 = vmatpush2.bf16.msra.mxu0 0
    %120 = vmatprep.subr.bf16.mxu0 0
    %121 = vmatpush2.bf16.msra.mxu0 0
    %122 = vmatprep.subr.bf16.mxu0 0
    %123 = vmatpush2.bf16.msra.mxu0 0
    %124 = vmatprep.subr.bf16.mxu0 0
    %125 = vmatpush2.bf16.msra.mxu0 0
    %126 = vmatprep.subr.bf16.mxu0 0
    %127 = vmatpush2.bf16.msra.mxu0 0
    %128 = vmatprep.subr.bf16.mxu0 0
    %129 = vmatpush2.bf16.msra.mxu0 0
    %130 = vmatprep.subr.bf16.mxu0 0
    %131 = vmatpush2.bf16.msra.mxu0 0
    %132 = vmatprep.subr.bf16.mxu0 0
    %133 = vmatpush2.bf16.msra.mxu0 0
    %134 = vmatprep.mubr.bf16.mxu0 0
    %135 = vmatmul.mubr.bf16.gmra.mxu0 %v100
    %v136 = vpop.f32.mrf.mxu0
    %v137 = vadd.f32 0.0, %v136
    %v138 = vpop.f32.mrf.mxu0
    %v139 = vpop.f32.mrf.mxu0
    %v140 = vpop.f32.mrf.mxu0
    %141 = vdwg.mxu0
    %v142 = vrot.slane %v137, 4
    %v143 = vadd.f32 %v137, %v142
    %v144 = vrot.slane %v143, 2
    %v145 = vadd.f32 %v143, %v144
    %v146 = vrot.slane %v145, 1
    %v147 = vadd.f32 %v145, %v146
    %v148 = vmul.f32 %v147, 0.125
    %v149 = vmul.f32 %v137, %v137
    %v150 = vrot.slane %v149, 4
    %v151 = vadd.f32 %v149, %v150
    %v152 = vrot.slane %v151, 2
    %v153 = vadd.f32 %v151, %v152
    %v154 = vrot.slane %v153, 1
    %v155 = vadd.f32 %v153, %v154
    %v156 = vmul.f32 %v155, 0.125
    %v157 = vmul.f32 %v148, %v148
    %v158 = vsub.f32 %v156, %v157
    %v159 = vmax.f32 %v158, 0.0
    %v160 = vld [vmem:[%s2] sm:$0x1]
    %v161 = vadd.f32 %v159, 1e-05
    %v162 = vrsqrt.pop %v161
    %v163 = vmul.f32 %v160, %v162
    %v164 = vld [vmem:[%s3] sm:$0x1]
    %v165 = vmul.f32 %v148, %v163
    %v166 = vsub.f32 %v164, %v165
    %v168 = vlaneseq
    %v169 = vshrl.u32 %v168, 7
    %v170 = vsub.s32 0, %v169
    %v171 = vrot.slane %v163, %v170
    %v173 = vmul.f32 %v137, %v171
    %v175 = vlaneseq
    %v176 = vshrl.u32 %v175, 7
    %v177 = vsub.s32 0, %v176
    %v178 = vrot.slane %v166, %v177
    %v180 = vadd.f32 %v173, %v178
    %v181 = vmax.f32 %v180, 0.0
    %v182 = vpack.c.bf16 %v181, %v181
    %v183 = vld [vmem:[#allocation7] sm:$0xf]
    %v184 = vld [vmem:[#allocation7 + $0x4] sm:$0xf]
    %v185 = vld [vmem:[#allocation7 + $0x8] sm:$0xf]
    %v186 = vld [vmem:[#allocation7 + $0xc] sm:$0xf]
    %v187 = vld [vmem:[#allocation7 + $0x10] sm:$0xf]
    %v188 = vld [vmem:[#allocation7 + $0x14] sm:$0xf]
    %v189 = vld [vmem:[#allocation7 + $0x18] sm:$0xf]
    %v190 = vld [vmem:[#allocation7 + $0x1c] sm:$0xf]
    %v191 = vld [vmem:[#allocation7 + $0x20] sm:$0xf]
    %v192 = vld [vmem:[#allocation7 + $0x24] sm:$0xf]
    %v193 = vld [vmem:[#allocation7 + $0x28] sm:$0xf]
    %v194 = vld [vmem:[#allocation7 + $0x2c] sm:$0xf]
    %v195 = vld [vmem:[#allocation7 + $0x30] sm:$0xf]
    %v196 = vld [vmem:[#allocation7 + $0x34] sm:$0xf]
    %v197 = vld [vmem:[#allocation7 + $0x38] sm:$0xf]
    %v198 = vld [vmem:[#allocation7 + $0x3c] sm:$0xf]
    %v199 = vld [vmem:[%s5] sm:$0x1]
    %v201 = vlaneseq
    %v202 = vshrl.u32 %v201, 7
    %v203 = vsub.s32 0, %v202
    %v204 = vrot.slane %v199, %v203
    %v222 = vunpack.c.l.b16 %v183
    %v223 = vunpack.c.l.b16 %v184
    %v224 = vunpack.c.l.b16 %v185
    %v225 = vunpack.c.l.b16 %v186
    %v226 = vunpack.c.l.b16 %v187
    %v227 = vunpack.c.l.b16 %v188
    %v228 = vunpack.c.l.b16 %v189
    %v229 = vunpack.c.l.b16 %v190
    %v230 = vunpack.c.l.b16 %v191
    %v231 = vunpack.c.l.b16 %v192
    %v232 = vunpack.c.l.b16 %v193
    %v233 = vunpack.c.l.b16 %v194
    %v234 = vunpack.c.l.b16 %v195
    %v235 = vunpack.c.l.b16 %v196
    %v236 = vunpack.c.l.b16 %v197
    %v237 = vunpack.c.l.b16 %v198
    %v238 = vpack.c.b16 %v223, %v222
    %v239 = vpack.c.b16 %v225, %v224
    %v240 = vpack.c.b16 %v227, %v226
    %v241 = vpack.c.b16 %v229, %v228
    %v242 = vpack.c.b16 %v231, %v230
    %v243 = vpack.c.b16 %v233, %v232
    %v244 = vpack.c.b16 %v235, %v234
    %v245 = vpack.c.b16 %v237, %v236
    %254 = vmatprep.subr.bf16.mxu0 0
    %255 = vmatpush1.bf16.msra.mxu0 %v245
    %256 = vmatprep.subr.bf16.mxu0 0
    %257 = vmatpush1.bf16.msra.mxu0 %v244
    %258 = vmatprep.subr.bf16.mxu0 0
    %259 = vmatpush1.bf16.msra.mxu0 %v243
    %260 = vmatprep.subr.bf16.mxu0 0
    %261 = vmatpush1.bf16.msra.mxu0 %v242
    %262 = vmatprep.subr.bf16.mxu0 0
    %263 = vmatpush1.bf16.msra.mxu0 %v241
    %264 = vmatprep.subr.bf16.mxu0 0
    %265 = vmatpush1.bf16.msra.mxu0 %v240
    %266 = vmatprep.subr.bf16.mxu0 0
    %267 = vmatpush1.bf16.msra.mxu0 %v239
    %268 = vmatprep.subr.bf16.mxu0 0
    %269 = vmatpush1.bf16.msra.mxu0 %v238
    %270 = vmatprep.subr.bf16.mxu0 0
    %271 = vmatpush2.bf16.msra.mxu0 0
    %272 = vmatprep.subr.bf16.mxu0 0
    %273 = vmatpush2.bf16.msra.mxu0 0
    %274 = vmatprep.subr.bf16.mxu0 0
    %275 = vmatpush2.bf16.msra.mxu0 0
    %276 = vmatprep.subr.bf16.mxu0 0
    %277 = vmatpush2.bf16.msra.mxu0 0
    %278 = vmatprep.subr.bf16.mxu0 0
    %279 = vmatpush2.bf16.msra.mxu0 0
    %280 = vmatprep.subr.bf16.mxu0 0
    %281 = vmatpush2.bf16.msra.mxu0 0
    %282 = vmatprep.subr.bf16.mxu0 0
    %283 = vmatpush2.bf16.msra.mxu0 0
    %284 = vmatprep.subr.bf16.mxu0 0
    %285 = vmatpush2.bf16.msra.mxu0 0
    %286 = vmatprep.mubr.bf16.mxu0 0
    %287 = vmatmul.mubr.bf16.gmra.mxu0 %v182
    %v288 = vpop.f32.mrf.mxu0
    %v289 = vadd.f32 %v204, %v288
    %v290 = vpop.f32.mrf.mxu0
    %v291 = vpop.f32.mrf.mxu0
    %v292 = vpop.f32.mrf.mxu0
    %293 = vdwg.mxu0
    %294 = vst [vmem:[#allocation8] sm:$0xff] %v289
    // Predicated region
    $region38: #{tpu_custom_call.1} parent=1 // pred_check
      _
    $region39: #{tpu_custom_call.1} parent=1 // pred_check_branch
      %296 = sbr.rel (0) target = $region41
    $region40: #{tpu_custom_call.1} parent=1 // pred_region
      %s298 = ssub.s32 128, 128
      %299 = vsyncadd [#allocation4], %s298
      %s301 = sshll.u32 [#allocation8], 4
      %s302 = int_to_ptr.vmem [resolvable:$true] %s301
      %304 = dma.vmem_to_hbm [thread:$0]  %s302, 128, %s6, [#allocation4]
    $region41: #{tpu_custom_call.1} parent=1 // pred_fallthru
      _
    // Predicated region
    $region42: #{tpu_custom_call.1} parent=1 // pred_check
      _
    $region43: #{tpu_custom_call.1} parent=1 // pred_check_branch
      %306 = sbr.rel (0) target = $region45
    $region44: #{tpu_custom_call.1} parent=1 // pred_region
      %307 = dma.done [#allocation4], 128
    $region45: #{tpu_custom_call.1} parent=1 // pred_fallthru
      _
    %308 = vsyncpa [#allocation3], 1
    %309 = vsyncpa [#allocation6], 1
    %310 = vsyncpa [#allocation4], 1

</llo_original>
